<compile_context>
chip_gen: v6e
topology: v6e:2x2x1
jax: 0.10.0
libtpu: 0.0.40
codegen_flags: <defaults>
</compile_context>

<pallas_src>
import functools

import jax
import jax.numpy as jnp
from jax.experimental import pallas as pl
from jax.experimental.pallas import tpu as pltpu


def policy_mlp_kernel(x_ref, w1_ref, b1_ref, w2_ref, b2_ref, w3_ref, b3_ref, o_ref):
    # Layer 1: Linear(state_dim -> hidden) + ReLU (f32 operands, f32 accumulate).
    h1 = jnp.dot(x_ref[...], w1_ref[...], preferred_element_type=jnp.float32)
    h1 = jnp.maximum(h1 + b1_ref[...], 0.0)

    # Layer 2: Linear(hidden -> hidden) + ReLU.
    h2 = jnp.dot(h1, w2_ref[...], preferred_element_type=jnp.float32)
    h2 = jnp.maximum(h2 + b2_ref[...], 0.0)

    # Layer 3: Linear(hidden -> action_dim) logits, stored at true width.
    out = jnp.dot(h2, w3_ref[...], preferred_element_type=jnp.float32)
    o_ref[...] = (out + b3_ref[...]).astype(o_ref.dtype)


@functools.partial(jax.jit, static_argnames=("block_b",))
def policy_network_forward(x, params, block_b=4096):
    """x: [B, state_dim] float32; params: dict of w1,b1,w2,b2,w3,b3 (all float32)."""
    w1, b1 = params["w1"], params["b1"]
    w2, b2 = params["w2"], params["b2"]
    w3, b3 = params["w3"], params["b3"]

    B, state_dim = x.shape
    hidden = w1.shape[1]
    action_dim = w3.shape[1]

    # Batch tile: as large as block_b allows (multiple of 8 sublanes). Pallas masks
    # the boundary block, so no explicit padding of B is needed.
    block_b = max(8, (block_b // 8) * 8)
    tb = B if B <= block_b else block_b
    grid = (pl.cdiv(B, tb),)

    # Weights/biases: constant block index -> DMA'd once, VMEM-resident all grid steps.
    def resident(a):
        return pl.BlockSpec(a.shape, lambda i: (0,) * a.ndim)

    flops = 2 * B * (state_dim * hidden + hidden * hidden + hidden * action_dim)
    bytes_accessed = 4 * (
        x.size + w1.size + w2.size + w3.size
        + b1.size + b2.size + b3.size
        + B * action_dim
    )

    return pl.pallas_call(
        policy_mlp_kernel,
        out_shape=jax.ShapeDtypeStruct((B, action_dim), jnp.float32),
        grid=grid,
        in_specs=[
            pl.BlockSpec((tb, state_dim), lambda i: (i, 0)),  # x: tiled over batch
            resident(w1), resident(b1),
            resident(w2), resident(b2),
            resident(w3), resident(b3),
        ],
        out_specs=pl.BlockSpec((tb, action_dim), lambda i: (i, 0)),
        compiler_params=pltpu.CompilerParams(
            dimension_semantics=("parallel",),
            vmem_limit_bytes=48 * 1024 * 1024,
        ),
        cost_estimate=pl.CostEstimate(
            flops=flops, transcendentals=0, bytes_accessed=bytes_accessed),
    )(x, w1, b1, w2, b2, w3, b3)


def init_params(key, state_dim, action_dim, hidden_dim=128):
    """Deterministic init mimicking nn.Linear default (uniform +/- 1/sqrt(fan_in))."""
    ks = jax.random.split(key, 6)

    def linear(kw, kb, fan_in, fan_out):
        bound = 1.0 / jnp.sqrt(fan_in)
        w = jax.random.uniform(kw, (fan_in, fan_out), jnp.float32, -bound, bound)
        b = jax.random.uniform(kb, (1, fan_out), jnp.float32, -bound, bound)
        return w, b

    w1, b1 = linear(ks[0], ks[1], state_dim, hidden_dim)
    w2, b2 = linear(ks[2], ks[3], hidden_dim, hidden_dim)
    w3, b3 = linear(ks[4], ks[5], hidden_dim, action_dim)
    return {"w1": w1, "b1": b1, "w2": w2, "b2": b2, "w3": w3, "b3": b3}


if __name__ == "__main__":
    key = jax.random.PRNGKey(0)
    k_x, k_p = jax.random.split(key)

    state_dim = 16
    action_dim = 8
    hidden_dim = 128
    params = init_params(k_p, state_dim, action_dim, hidden_dim)

    # Pure-JAX f32 reference (same math as the PyTorch PolicyNetwork forward).
    def ref(x, p):
        h = jnp.maximum(
            jnp.dot(x, p["w1"], preferred_element_type=jnp.float32) + p["b1"], 0.0)
        h = jnp.maximum(
            jnp.dot(h, p["w2"], preferred_element_type=jnp.float32) + p["b2"], 0.0)
        return jnp.dot(h, p["w3"], preferred_element_type=jnp.float32) + p["b3"]

    # Case 1: tiny batch, single grid step. Case 2: multi-step grid with a
    # non-divisible boundary block (exercises Pallas read-padding / write-masking).
    for batch, blk in ((8, 4096), (200, 64)):
        x = jax.random.normal(jax.random.fold_in(k_x, batch),
                              (batch, state_dim), dtype=jnp.float32)
        out = policy_network_forward(x, params, block_b=blk)
        jax.block_until_ready(out)

        expected = ref(x, params)
        assert out.shape == (batch, action_dim)
        assert jnp.allclose(out, expected, atol=1e-2, rtol=1e-2)

    print("KERNEL_OK")
</pallas_src>

<mosaic_0001>
module attributes {stable_mosaic.version = 11 : i64} {
  func.func @policy_mlp_kernel(%arg0: i32, %arg1: memref<8x16xf32, #tpu.memory_space<vmem>>, %arg2: memref<16x128xf32, #tpu.memory_space<vmem>>, %arg3: memref<1x128xf32, #tpu.memory_space<vmem>>, %arg4: memref<128x128xf32, #tpu.memory_space<vmem>>, %arg5: memref<1x128xf32, #tpu.memory_space<vmem>>, %arg6: memref<128x8xf32, #tpu.memory_space<vmem>>, %arg7: memref<1x8xf32, #tpu.memory_space<vmem>>, %arg8: memref<8x8xf32, #tpu.memory_space<vmem>>) attributes {dimension_semantics = [#tpu.dimension_semantics<parallel>], iteration_bounds = array<i64: 1>, scalar_prefetch = 0 : i64, scratch_operands = 0 : i64, tpu.core_type = #tpu.core_type<tc>, window_params = [{transform_indices = @transform_0, window_bounds = array<i64: 8, 16>}, {pipeline_mode = #tpu.pipeline_mode<synchronous>, transform_indices = @transform_1, window_bounds = array<i64: 16, 128>}, {pipeline_mode = #tpu.pipeline_mode<synchronous>, transform_indices = @transform_2, window_bounds = array<i64: 1, 128>}, {pipeline_mode = #tpu.pipeline_mode<synchronous>, transform_indices = @transform_3, window_bounds = array<i64: 128, 128>}, {pipeline_mode = #tpu.pipeline_mode<synchronous>, transform_indices = @transform_4, window_bounds = array<i64: 1, 128>}, {pipeline_mode = #tpu.pipeline_mode<synchronous>, transform_indices = @transform_5, window_bounds = array<i64: 128, 8>}, {pipeline_mode = #tpu.pipeline_mode<synchronous>, transform_indices = @transform_6, window_bounds = array<i64: 1, 8>}, {transform_indices = @transform_7, window_bounds = array<i64: 8, 8>}]} {
    %c0 = arith.constant 0 : index
    %c0_0 = arith.constant 0 : index
    %0 = vector.load %arg1[%c0, %c0_0] : memref<8x16xf32, #tpu.memory_space<vmem>>, vector<8x16xf32>
    %c0_1 = arith.constant 0 : index
    %c0_2 = arith.constant 0 : index
    %1 = vector.load %arg2[%c0_1, %c0_2] : memref<16x128xf32, #tpu.memory_space<vmem>>, vector<16x128xf32>
    %cst = arith.constant dense<0.000000e+00> : vector<8x128xf32>
    %2 = tpu.matmul %0, %1, %cst {dimension_numbers = #tpu.dot_dimension_numbers<[1], [0], [0], [1], [0, 0, 1, 1], [], []>} : vector<8x16xf32>, vector<16x128xf32>, vector<8x128xf32> -> vector<8x128xf32>
    %c0_3 = arith.constant 0 : index
    %c0_4 = arith.constant 0 : index
    %3 = vector.load %arg3[%c0_3, %c0_4] : memref<1x128xf32, #tpu.memory_space<vmem>>, vector<1x128xf32>
    %4 = vector.broadcast %3 : vector<1x128xf32> to vector<8x128xf32>
    %5 = arith.addf %2, %4 : vector<8x128xf32>
    %cst_5 = arith.constant 0.000000e+00 : f32
    %6 = vector.broadcast %cst_5 : f32 to vector<8x128xf32>
    %7 = arith.maximumf %5, %6 : vector<8x128xf32>
    %c0_6 = arith.constant 0 : index
    %c0_7 = arith.constant 0 : index
    %8 = vector.load %arg4[%c0_6, %c0_7] : memref<128x128xf32, #tpu.memory_space<vmem>>, vector<128x128xf32>
    %cst_8 = arith.constant dense<0.000000e+00> : vector<8x128xf32>
    %9 = tpu.matmul %7, %8, %cst_8 {dimension_numbers = #tpu.dot_dimension_numbers<[1], [0], [0], [1], [0, 0, 1, 1], [], []>} : vector<8x128xf32>, vector<128x128xf32>, vector<8x128xf32> -> vector<8x128xf32>
    %c0_9 = arith.constant 0 : index
    %c0_10 = arith.constant 0 : index
    %10 = vector.load %arg5[%c0_9, %c0_10] : memref<1x128xf32, #tpu.memory_space<vmem>>, vector<1x128xf32>
    %11 = vector.broadcast %10 : vector<1x128xf32> to vector<8x128xf32>
    %12 = arith.addf %9, %11 : vector<8x128xf32>
    %cst_11 = arith.constant 0.000000e+00 : f32
    %13 = vector.broadcast %cst_11 : f32 to vector<8x128xf32>
    %14 = arith.maximumf %12, %13 : vector<8x128xf32>
    %c0_12 = arith.constant 0 : index
    %c0_13 = arith.constant 0 : index
    %15 = vector.load %arg6[%c0_12, %c0_13] : memref<128x8xf32, #tpu.memory_space<vmem>>, vector<128x8xf32>
    %cst_14 = arith.constant dense<0.000000e+00> : vector<8x8xf32>
    %16 = tpu.matmul %14, %15, %cst_14 {dimension_numbers = #tpu.dot_dimension_numbers<[1], [0], [0], [1], [0, 0, 1, 1], [], []>} : vector<8x128xf32>, vector<128x8xf32>, vector<8x8xf32> -> vector<8x8xf32>
    %c0_15 = arith.constant 0 : index
    %c0_16 = arith.constant 0 : index
    %17 = vector.load %arg7[%c0_15, %c0_16] : memref<1x8xf32, #tpu.memory_space<vmem>>, vector<1x8xf32>
    %18 = vector.broadcast %17 : vector<1x8xf32> to vector<8x8xf32>
    %19 = arith.addf %16, %18 : vector<8x8xf32>
    %c0_17 = arith.constant 0 : index
    %c0_18 = arith.constant 0 : index
    %20 = vector.load %arg8[%c0_17, %c0_18] : memref<8x8xf32, #tpu.memory_space<vmem>>, vector<8x8xf32>
    tpu.vector_store %arg8[%c0_17, %c0_18], %19 {strides = array<i32>} : memref<8x8xf32, #tpu.memory_space<vmem>>, vector<8x8xf32>,
    return
  }
  func.func @transform_0(%arg0: i32) -> (i32, i32) {
    %c0_i32 = arith.constant 0 : i32
    %c0_i32_0 = arith.constant 0 : i32
    return %arg0, %c0_i32 : i32, i32
  }
  func.func @transform_1(%arg0: i32) -> (i32, i32) {
    %c0_i32 = arith.constant 0 : i32
    %c0_i32_0 = arith.constant 0 : i32
    %c0_i32_1 = arith.constant 0 : i32
    return %c0_i32, %c0_i32_0 : i32, i32
  }
  func.func @transform_2(%arg0: i32) -> (i32, i32) {
    %c0_i32 = arith.constant 0 : i32
    %c0_i32_0 = arith.constant 0 : i32
    %c0_i32_1 = arith.constant 0 : i32
    return %c0_i32, %c0_i32_0 : i32, i32
  }
  func.func @transform_3(%arg0: i32) -> (i32, i32) {
    %c0_i32 = arith.constant 0 : i32
    %c0_i32_0 = arith.constant 0 : i32
    %c0_i32_1 = arith.constant 0 : i32
    return %c0_i32, %c0_i32_0 : i32, i32
  }
  func.func @transform_4(%arg0: i32) -> (i32, i32) {
    %c0_i32 = arith.constant 0 : i32
    %c0_i32_0 = arith.constant 0 : i32
    %c0_i32_1 = arith.constant 0 : i32
    return %c0_i32, %c0_i32_0 : i32, i32
  }
  func.func @transform_5(%arg0: i32) -> (i32, i32) {
    %c0_i32 = arith.constant 0 : i32
    %c0_i32_0 = arith.constant 0 : i32
    %c0_i32_1 = arith.constant 0 : i32
    return %c0_i32, %c0_i32_0 : i32, i32
  }
  func.func @transform_6(%arg0: i32) -> (i32, i32) {
    %c0_i32 = arith.constant 0 : i32
    %c0_i32_0 = arith.constant 0 : i32
    %c0_i32_1 = arith.constant 0 : i32
    return %c0_i32, %c0_i32_0 : i32, i32
  }
  func.func @transform_7(%arg0: i32) -> (i32, i32) {
    %c0_i32 = arith.constant 0 : i32
    %c0_i32_0 = arith.constant 0 : i32
    return %arg0, %c0_i32 : i32, i32
  }
}

</mosaic_0001>

<llo_original>
// kernel: policy_network_forward.1
$region0: #{policy_network_forward.1}
  #allocation0 [shape = 'u32[]', space=smem, size = 0x4, offset = 0x4, fixed_abs, tag = 'smem constant byte address 0x4 - core index']
  #allocation1 [shape = 'u32[144,128]{1,0:T(1,128)}', space=vmem, size = 0x12000, scoped, tag = 'internal scratch']
  %s0 = inlined_call_operand.hbm [shape: f32[8,16], index: 0, kind: input, shape index: {}]
  %s1 = inlined_call_operand.vmem [shape: f32[16,128], index: 1, kind: input, shape index: {}]
  %s2 = inlined_call_operand.vmem [shape: f32[1,128], index: 2, kind: input, shape index: {}]
  %s3 = inlined_call_operand.vmem [shape: f32[128,128], index: 3, kind: input, shape index: {}]
  %s4 = inlined_call_operand.hbm [shape: f32[1,128], index: 4, kind: input, shape index: {}]
  %s5 = inlined_call_operand.vmem [shape: f32[128,8], index: 5, kind: input, shape index: {}]
  %s6 = inlined_call_operand.hbm [shape: f32[1,8], index: 6, kind: input, shape index: {}]
  %s7 = inlined_call_operand.hbm [shape: f32[8,8], index: 7, kind: output, shape index: {}]
  %s8 = sld [smem:[#allocation0]]
  $region50: #{policy_network_forward.1} parent=0
    _
  %s10 = ssub.s32 1, %s8
  %s11 = scalar_select 0, %s10, %s8
  $region1: #{policy_network_forward.1} parent=0
    #allocation2 [shape = 'u8[4096]{0}', space=vmem, size = 0x1000, scoped, tag = 'input window, operand 0, single buffered']
    #allocation3 [shape = 's32[1]{0}', space=sflag, size = 0x4, scoped, tag = 'scoped memory for policy_network_forward.1']
    #allocation4 [shape = 's32[1]{0}', space=sflag, size = 0x4, scoped, tag = 'scoped memory for policy_network_forward.1']
    #allocation5 [shape = 'u8[512]{0}', space=vmem, size = 0x400, scoped, tag = 'input window, operand 4, single buffered']
    #allocation6 [shape = 's32[1]{0}', space=sflag, size = 0x4, scoped, tag = 'scoped memory for policy_network_forward.1']
    #allocation7 [shape = 'u8[512]{0}', space=vmem, size = 0x400, scoped, tag = 'input window, operand 6, single buffered']
    #allocation8 [shape = 'u8[4096]{0}', space=vmem, size = 0x1000, scoped, tag = 'output window, operand 0, single buffered']
    %12 = vsyncpa [#allocation3], 0
    %13 = vsyncpa [#allocation6], 0
    %14 = vsyncpa [#allocation4], 0
    // Predicated region
    $region2: #{policy_network_forward.1} parent=1 // pred_check
      _
    $region3: #{policy_network_forward.1} parent=1 // pred_check_branch
      %16 = sbr.rel (0) target = $region5
    $region4: #{policy_network_forward.1} parent=1 // pred_region
      %s18 = ssub.s32 128, 128
      %19 = vsyncadd [#allocation3], %s18
      %s21 = sshll.u32 [#allocation2], 4
      %s22 = int_to_ptr.vmem [resolvable:$true] %s21
      %24 = dma.hbm_to_vmem [thread:$0]  %s0, 128, %s22, [#allocation3]
    $region5: #{policy_network_forward.1} parent=1 // pred_fallthru
      _
    // Predicated region
    $region6: #{policy_network_forward.1} parent=1 // pred_check
      _
    $region7: #{policy_network_forward.1} parent=1 // pred_check_branch
      %26 = sbr.rel (0) target = $region9
    $region8: #{policy_network_forward.1} parent=1 // pred_region
      _
    $region9: #{policy_network_forward.1} parent=1 // pred_fallthru
      _
    // Predicated region
    $region10: #{policy_network_forward.1} parent=1 // pred_check
      _
    $region11: #{policy_network_forward.1} parent=1 // pred_check_branch
      %28 = sbr.rel (0) target = $region13
    $region12: #{policy_network_forward.1} parent=1 // pred_region
      _
    $region13: #{policy_network_forward.1} parent=1 // pred_fallthru
      _
    // Predicated region
    $region14: #{policy_network_forward.1} parent=1 // pred_check
      _
    $region15: #{policy_network_forward.1} parent=1 // pred_check_branch
      %30 = sbr.rel (0) target = $region17
    $region16: #{policy_network_forward.1} parent=1 // pred_region
      _
    $region17: #{policy_network_forward.1} parent=1 // pred_fallthru
      _
    // Predicated region
    $region18: #{policy_network_forward.1} parent=1 // pred_check
      _
    $region19: #{policy_network_forward.1} parent=1 // pred_check_branch
      %32 = sbr.rel (0) target = $region21
    $region20: #{policy_network_forward.1} parent=1 // pred_region
      %s34 = ssub.s32 16, 16
      %35 = vsyncadd [#allocation6], %s34
      %s37 = sshll.u32 [#allocation5], 4
      %s38 = int_to_ptr.vmem [resolvable:$true] %s37
      %40 = dma.hbm_to_vmem [thread:$0]  %s4, 16, %s38, [#allocation6]
    $region21: #{policy_network_forward.1} parent=1 // pred_fallthru
      _
    // Predicated region
    $region22: #{policy_network_forward.1} parent=1 // pred_check
      _
    $region23: #{policy_network_forward.1} parent=1 // pred_check_branch
      %42 = sbr.rel (0) target = $region25
    $region24: #{policy_network_forward.1} parent=1 // pred_region
      _
    $region25: #{policy_network_forward.1} parent=1 // pred_fallthru
      _
    // Predicated region
    $region26: #{policy_network_forward.1} parent=1 // pred_check
      _
    $region27: #{policy_network_forward.1} parent=1 // pred_check_branch
      %44 = sbr.rel (0) target = $region29
    $region28: #{policy_network_forward.1} parent=1 // pred_region
      %s46 = ssub.s32 16, 16
      %47 = vsyncadd [#allocation6], %s46
      %s49 = sshll.u32 [#allocation7], 4
      %s50 = int_to_ptr.vmem [resolvable:$true] %s49
      %52 = dma.hbm_to_vmem [thread:$0]  %s6, 16, %s50, [#allocation6]
    $region29: #{policy_network_forward.1} parent=1 // pred_fallthru
      _
    // Predicated region
    $region30: #{policy_network_forward.1} parent=1 // pred_check
      _
    $region31: #{policy_network_forward.1} parent=1 // pred_check_branch
      %54 = sbr.rel (0) target = $region33
    $region32: #{policy_network_forward.1} parent=1 // pred_region
      %55 = dma.done [#allocation3], 128
    $region33: #{policy_network_forward.1} parent=1 // pred_fallthru
      _
    // Predicated region
    $region34: #{policy_network_forward.1} parent=1 // pred_check
      _
    $region35: #{policy_network_forward.1} parent=1 // pred_check_branch
      %57 = sbr.rel (0) target = $region37
    $region36: #{policy_network_forward.1} parent=1 // pred_region
      %58 = dma.done [#allocation6], 16
    $region37: #{policy_network_forward.1} parent=1 // pred_fallthru
      _
    // Predicated region
    $region38: #{policy_network_forward.1} parent=1 // pred_check
      _
    $region39: #{policy_network_forward.1} parent=1 // pred_check_branch
      %60 = sbr.rel (0) target = $region41
    $region40: #{policy_network_forward.1} parent=1 // pred_region
      %61 = dma.done [#allocation6], 16
    $region41: #{policy_network_forward.1} parent=1 // pred_fallthru
      _
    %v62 = vld [vmem:[#allocation2] sm:$0xff]
    %v63 = vld [vmem:[%s1] sm:$0xff]
    %v64 = vld [vmem:[%s1 + $0x8] sm:$0xff]
    %v65 = vld [vmem:[%s2] sm:$0x1]
    %v67 = vlaneseq
    %v68 = vshrl.u32 %v67, 7
    %v69 = vsub.s32 0, %v68
    %v70 = vrot.slane %v65, %v69
    %vm72 = vcmask 130048
    %v74 = vsel %vm72, %v62, 0
    %76 = vmatprep.subr.mxu0 0.0
    %77 = vmatpush1.msra.mxu0 0.0
    %78 = vmatprep.subr.mxu0 0.0
    %79 = vmatpush1.msra.mxu0 0.0
    %80 = vmatprep.subr.mxu0 0.0
    %81 = vmatpush1.msra.mxu0 0.0
    %82 = vmatprep.subr.mxu0 0.0
    %83 = vmatpush1.msra.mxu0 0.0
    %84 = vmatprep.subr.mxu0 0.0
    %85 = vmatpush1.msra.mxu0 0.0
    %86 = vmatprep.subr.mxu0 0.0
    %87 = vmatpush1.msra.mxu0 0.0
    %88 = vmatprep.subr.mxu0 0.0
    %89 = vmatpush1.msra.mxu0 0.0
    %90 = vmatprep.subr.mxu0 0.0
    %91 = vmatpush1.msra.mxu0 0.0
    %92 = vmatprep.subr.mxu0 0.0
    %93 = vmatpush1.msra.mxu0 0.0
    %94 = vmatprep.subr.mxu0 0.0
    %95 = vmatpush1.msra.mxu0 0.0
    %96 = vmatprep.subr.mxu0 0.0
    %97 = vmatpush1.msra.mxu0 0.0
    %98 = vmatprep.subr.mxu0 0.0
    %99 = vmatpush1.msra.mxu0 0.0
    %100 = vmatprep.subr.mxu0 0.0
    %101 = vmatpush1.msra.mxu0 0.0
    %102 = vmatprep.subr.mxu0 0.0
    %103 = vmatpush1.msra.mxu0 0.0
    %104 = vmatprep.subr.mxu0 0.0
    %105 = vmatpush1.msra.mxu0 %v64
    %106 = vmatprep.subr.mxu0 0.0
    %107 = vmatpush1.msra.mxu0 %v63
    %108 = vmatprep.subr.mxu0 0.0
    %109 = vmatpush2.msra.mxu0 0.0
    %110 = vmatprep.subr.mxu0 0.0
    %111 = vmatpush2.msra.mxu0 0.0
    %112 = vmatprep.subr.mxu0 0.0
    %113 = vmatpush2.msra.mxu0 0.0
    %114 = vmatprep.subr.mxu0 0.0
    %115 = vmatpush2.msra.mxu0 0.0
    %116 = vmatprep.subr.mxu0 0.0
    %117 = vmatpush2.msra.mxu0 0.0
    %118 = vmatprep.subr.mxu0 0.0
    %119 = vmatpush2.msra.mxu0 0.0
    %120 = vmatprep.subr.mxu0 0.0
    %121 = vmatpush2.msra.mxu0 0.0
    %122 = vmatprep.subr.mxu0 0.0
    %123 = vmatpush2.msra.mxu0 0.0
    %124 = vmatprep.subr.mxu0 0.0
    %125 = vmatpush2.msra.mxu0 0.0
    %126 = vmatprep.subr.mxu0 0.0
    %127 = vmatpush2.msra.mxu0 0.0
    %128 = vmatprep.subr.mxu0 0.0
    %129 = vmatpush2.msra.mxu0 0.0
    %130 = vmatprep.subr.mxu0 0.0
    %131 = vmatpush2.msra.mxu0 0.0
    %132 = vmatprep.subr.mxu0 0.0
    %133 = vmatpush2.msra.mxu0 0.0
    %134 = vmatprep.subr.mxu0 0.0
    %135 = vmatpush2.msra.mxu0 0.0
    %136 = vmatprep.subr.mxu0 0.0
    %137 = vmatpush2.msra.mxu0 0.0
    %138 = vmatprep.subr.mxu0 0.0
    %139 = vmatpush2.msra.mxu0 0.0
    %140 = vmatprep.mubr.f32.mxu0 0.0
    %141 = vmatmul.mubr.f32.gmra.mxu0 %v74
    %v142 = vpop.f32.mrf.mxu0
    %v143 = vadd.f32 %v70, %v142
    %v144 = vpop.f32.mrf.mxu0
    %145 = vdwg.mxu0
    %v146 = vmax.f32 %v143, 0.0
    %v147 = vld [vmem:[%s3] sm:$0xff]
    %v148 = vld [vmem:[%s3 + $0x8] sm:$0xff]
    %v149 = vld [vmem:[%s3 + $0x10] sm:$0xff]
    %v150 = vld [vmem:[%s3 + $0x18] sm:$0xff]
    %v151 = vld [vmem:[%s3 + $0x20] sm:$0xff]
    %v152 = vld [vmem:[%s3 + $0x28] sm:$0xff]
    %v153 = vld [vmem:[%s3 + $0x30] sm:$0xff]
    %v154 = vld [vmem:[%s3 + $0x38] sm:$0xff]
    %v155 = vld [vmem:[%s3 + $0x40] sm:$0xff]
    %v156 = vld [vmem:[%s3 + $0x48] sm:$0xff]
    %v157 = vld [vmem:[%s3 + $0x50] sm:$0xff]
    %v158 = vld [vmem:[%s3 + $0x58] sm:$0xff]
    %v159 = vld [vmem:[%s3 + $0x60] sm:$0xff]
    %v160 = vld [vmem:[%s3 + $0x68] sm:$0xff]
    %v161 = vld [vmem:[%s3 + $0x70] sm:$0xff]
    %v162 = vld [vmem:[%s3 + $0x78] sm:$0xff]
    %v163 = vld [vmem:[#allocation5] sm:$0x1]
    %v165 = vlaneseq
    %v166 = vshrl.u32 %v165, 7
    %v167 = vsub.s32 0, %v166
    %v168 = vrot.slane %v163, %v167
    %170 = vmatprep.subr.mxu0 0.0
    %171 = vmatpush1.msra.mxu0 %v162
    %172 = vmatprep.subr.mxu0 0.0
    %173 = vmatpush1.msra.mxu0 %v161
    %174 = vmatprep.subr.mxu0 0.0
    %175 = vmatpush1.msra.mxu0 %v160
    %176 = vmatprep.subr.mxu0 0.0
    %177 = vmatpush1.msra.mxu0 %v159
    %178 = vmatprep.subr.mxu0 0.0
    %179 = vmatpush1.msra.mxu0 %v158
    %180 = vmatprep.subr.mxu0 0.0
    %181 = vmatpush1.msra.mxu0 %v157
    %182 = vmatprep.subr.mxu0 0.0
    %183 = vmatpush1.msra.mxu0 %v156
    %184 = vmatprep.subr.mxu0 0.0
    %185 = vmatpush1.msra.mxu0 %v155
    %186 = vmatprep.subr.mxu0 0.0
    %187 = vmatpush1.msra.mxu0 %v154
    %188 = vmatprep.subr.mxu0 0.0
    %189 = vmatpush1.msra.mxu0 %v153
    %190 = vmatprep.subr.mxu0 0.0
    %191 = vmatpush1.msra.mxu0 %v152
    %192 = vmatprep.subr.mxu0 0.0
    %193 = vmatpush1.msra.mxu0 %v151
    %194 = vmatprep.subr.mxu0 0.0
    %195 = vmatpush1.msra.mxu0 %v150
    %196 = vmatprep.subr.mxu0 0.0
    %197 = vmatpush1.msra.mxu0 %v149
    %198 = vmatprep.subr.mxu0 0.0
    %199 = vmatpush1.msra.mxu0 %v148
    %200 = vmatprep.subr.mxu0 0.0
    %201 = vmatpush1.msra.mxu0 %v147
    %202 = vmatprep.subr.mxu0 0.0
    %203 = vmatpush2.msra.mxu0 0.0
    %204 = vmatprep.subr.mxu0 0.0
    %205 = vmatpush2.msra.mxu0 0.0
    %206 = vmatprep.subr.mxu0 0.0
    %207 = vmatpush2.msra.mxu0 0.0
    %208 = vmatprep.subr.mxu0 0.0
    %209 = vmatpush2.msra.mxu0 0.0
    %210 = vmatprep.subr.mxu0 0.0
    %211 = vmatpush2.msra.mxu0 0.0
    %212 = vmatprep.subr.mxu0 0.0
    %213 = vmatpush2.msra.mxu0 0.0
    %214 = vmatprep.subr.mxu0 0.0
    %215 = vmatpush2.msra.mxu0 0.0
    %216 = vmatprep.subr.mxu0 0.0
    %217 = vmatpush2.msra.mxu0 0.0
    %218 = vmatprep.subr.mxu0 0.0
    %219 = vmatpush2.msra.mxu0 0.0
    %220 = vmatprep.subr.mxu0 0.0
    %221 = vmatpush2.msra.mxu0 0.0
    %222 = vmatprep.subr.mxu0 0.0
    %223 = vmatpush2.msra.mxu0 0.0
    %224 = vmatprep.subr.mxu0 0.0
    %225 = vmatpush2.msra.mxu0 0.0
    %226 = vmatprep.subr.mxu0 0.0
    %227 = vmatpush2.msra.mxu0 0.0
    %228 = vmatprep.subr.mxu0 0.0
    %229 = vmatpush2.msra.mxu0 0.0
    %230 = vmatprep.subr.mxu0 0.0
    %231 = vmatpush2.msra.mxu0 0.0
    %232 = vmatprep.subr.mxu0 0.0
    %233 = vmatpush2.msra.mxu0 0.0
    %234 = vmatprep.mubr.f32.mxu0 0.0
    %235 = vmatmul.mubr.f32.gmra.mxu0 %v146
    %v236 = vpop.f32.mrf.mxu0
    %v237 = vadd.f32 %v168, %v236
    %v238 = vpop.f32.mrf.mxu0
    %239 = vdwg.mxu0
    %v240 = vmax.f32 %v237, 0.0
    %v241 = vld [vmem:[%s5] sm:$0xff]
    %v242 = vld [vmem:[%s5 + $0x8] sm:$0xff]
    %v243 = vld [vmem:[%s5 + $0x10] sm:$0xff]
    %v244 = vld [vmem:[%s5 + $0x18] sm:$0xff]
    %v245 = vld [vmem:[%s5 + $0x20] sm:$0xff]
    %v246 = vld [vmem:[%s5 + $0x28] sm:$0xff]
    %v247 = vld [vmem:[%s5 + $0x30] sm:$0xff]
    %v248 = vld [vmem:[%s5 + $0x38] sm:$0xff]
    %v249 = vld [vmem:[%s5 + $0x40] sm:$0xff]
    %v250 = vld [vmem:[%s5 + $0x48] sm:$0xff]
    %v251 = vld [vmem:[%s5 + $0x50] sm:$0xff]
    %v252 = vld [vmem:[%s5 + $0x58] sm:$0xff]
    %v253 = vld [vmem:[%s5 + $0x60] sm:$0xff]
    %v254 = vld [vmem:[%s5 + $0x68] sm:$0xff]
    %v255 = vld [vmem:[%s5 + $0x70] sm:$0xff]
    %v256 = vld [vmem:[%s5 + $0x78] sm:$0xff]
    %v257 = vld [vmem:[#allocation7] sm:$0x1]
    %v259 = vlaneseq
    %v260 = vshrl.u32 %v259, 7
    %v261 = vsub.s32 0, %v260
    %v262 = vrot.slane %v257, %v261
    %264 = vmatprep.subr.mxu0 0.0
    %265 = vmatpush1.msra.mxu0 %v256
    %266 = vmatprep.subr.mxu0 0.0
    %267 = vmatpush1.msra.mxu0 %v255
    %268 = vmatprep.subr.mxu0 0.0
    %269 = vmatpush1.msra.mxu0 %v254
    %270 = vmatprep.subr.mxu0 0.0
    %271 = vmatpush1.msra.mxu0 %v253
    %272 = vmatprep.subr.mxu0 0.0
    %273 = vmatpush1.msra.mxu0 %v252
    %274 = vmatprep.subr.mxu0 0.0
    %275 = vmatpush1.msra.mxu0 %v251
    %276 = vmatprep.subr.mxu0 0.0
    %277 = vmatpush1.msra.mxu0 %v250
    %278 = vmatprep.subr.mxu0 0.0
    %279 = vmatpush1.msra.mxu0 %v249
    %280 = vmatprep.subr.mxu0 0.0
    %281 = vmatpush1.msra.mxu0 %v248
    %282 = vmatprep.subr.mxu0 0.0
    %283 = vmatpush1.msra.mxu0 %v247
    %284 = vmatprep.subr.mxu0 0.0
    %285 = vmatpush1.msra.mxu0 %v246
    %286 = vmatprep.subr.mxu0 0.0
    %287 = vmatpush1.msra.mxu0 %v245
    %288 = vmatprep.subr.mxu0 0.0
    %289 = vmatpush1.msra.mxu0 %v244
    %290 = vmatprep.subr.mxu0 0.0
    %291 = vmatpush1.msra.mxu0 %v243
    %292 = vmatprep.subr.mxu0 0.0
    %293 = vmatpush1.msra.mxu0 %v242
    %294 = vmatprep.subr.mxu0 0.0
    %295 = vmatpush1.msra.mxu0 %v241
    %296 = vmatprep.subr.mxu0 0.0
    %297 = vmatpush2.msra.mxu0 0.0
    %298 = vmatprep.subr.mxu0 0.0
    %299 = vmatpush2.msra.mxu0 0.0
    %300 = vmatprep.subr.mxu0 0.0
    %301 = vmatpush2.msra.mxu0 0.0
    %302 = vmatprep.subr.mxu0 0.0
    %303 = vmatpush2.msra.mxu0 0.0
    %304 = vmatprep.subr.mxu0 0.0
    %305 = vmatpush2.msra.mxu0 0.0
    %306 = vmatprep.subr.mxu0 0.0
    %307 = vmatpush2.msra.mxu0 0.0
    %308 = vmatprep.subr.mxu0 0.0
    %309 = vmatpush2.msra.mxu0 0.0
    %310 = vmatprep.subr.mxu0 0.0
    %311 = vmatpush2.msra.mxu0 0.0
    %312 = vmatprep.subr.mxu0 0.0
    %313 = vmatpush2.msra.mxu0 0.0
    %314 = vmatprep.subr.mxu0 0.0
    %315 = vmatpush2.msra.mxu0 0.0
    %316 = vmatprep.subr.mxu0 0.0
    %317 = vmatpush2.msra.mxu0 0.0
    %318 = vmatprep.subr.mxu0 0.0
    %319 = vmatpush2.msra.mxu0 0.0
    %320 = vmatprep.subr.mxu0 0.0
    %321 = vmatpush2.msra.mxu0 0.0
    %322 = vmatprep.subr.mxu0 0.0
    %323 = vmatpush2.msra.mxu0 0.0
    %324 = vmatprep.subr.mxu0 0.0
    %325 = vmatpush2.msra.mxu0 0.0
    %326 = vmatprep.subr.mxu0 0.0
    %327 = vmatpush2.msra.mxu0 0.0
    %328 = vmatprep.mubr.f32.mxu0 0.0
    %329 = vmatmul.mubr.f32.gmra.mxu0 %v240
    %v330 = vpop.f32.mrf.mxu0
    %v331 = vadd.f32 %v262, %v330
    %v332 = vpop.f32.mrf.mxu0
    %333 = vdwg.mxu0
    %vm334 = vcmask 64512
    %335 = vst.msk [vmem:[#allocation8] sm:$0xff] %vm334, %v331
    // Predicated region
    $region42: #{policy_network_forward.1} parent=1 // pred_check
      _
    $region43: #{policy_network_forward.1} parent=1 // pred_check_branch
      %337 = sbr.rel (0) target = $region45
    $region44: #{policy_network_forward.1} parent=1 // pred_region
      %s339 = ssub.s32 128, 128
      %340 = vsyncadd [#allocation4], %s339
      %s342 = sshll.u32 [#allocation8], 4
      %s343 = int_to_ptr.vmem [resolvable:$true] %s342
      %345 = dma.vmem_to_hbm [thread:$0]  %s343, 128, %s7, [#allocation4]
    $region45: #{policy_network_forward.1} parent=1 // pred_fallthru
      _
    // Predicated region
    $region46: #{policy_network_forward.1} parent=1 // pred_check
      _
    $region47: #{policy_network_forward.1} parent=1 // pred_check_branch
      %347 = sbr.rel (0) target = $region49
    $region48: #{policy_network_forward.1} parent=1 // pred_region
      %348 = dma.done [#allocation4], 128
    $region49: #{policy_network_forward.1} parent=1 // pred_fallthru
      _
    %349 = vsyncpa [#allocation3], 1
    %350 = vsyncpa [#allocation6], 1
    %351 = vsyncpa [#allocation4], 1

</llo_original>
